<compile_context>
chip_gen: v6e
topology: v6e:2x2x1
jax: 0.10.0
libtpu: 0.0.40
codegen_flags: <defaults>
</compile_context>

<pallas_src>
import jax
import jax.numpy as jnp
from jax.experimental import pallas as pl
from jax.experimental.pallas import tpu as pltpu


BOTTLENECK = 512
BN_EPS = 1e-5
LEAKY_SLOPE = 0.1          # matches nn.LeakyReLU(0.1) in the PyTorch ClassHead


def _round_up(x, m):
    return ((x + m - 1) // m) * m


def _pick_batch_tile(B, tb):
    """Batch tile: >=16 rows (bf16-output packing), 256-multiples for the
    256x256 MXU on v6e/v7x, and >=2 grid steps at large B (v7x megacore)."""
    if B <= 256:
        return min(_round_up(B, 16), 256)
    two_way = _round_up(pl.cdiv(B, 2), 256)        # at least 2 grid steps
    return max(256, min(_round_up(tb, 256), two_way))


# ----------------------------------------------------------------------------
# Kernel: one batch tile per grid step.  BN is pre-folded into (w1, b1).
# ----------------------------------------------------------------------------
def class_head_kernel(x_ref, w1_ref, b1_ref, w2_ref, b2_ref, o_ref):
    # On-chip f32 -> bf16 cast of the activations (VPU work, hidden under MXU).
    x = x_ref[...].astype(jnp.bfloat16)

    # --- Linear(input_dim -> 512) with eval-mode BN folded in (f32 acc) ---
    h = jnp.dot(x, w1_ref[...], preferred_element_type=jnp.float32) + b1_ref[...]

    # --- LeakyReLU(0.1) ---
    h = jnp.where(h > 0, h, LEAKY_SLOPE * h)

    # --- Dropout(p=0.5): identity in eval mode ---

    # --- Linear(512 -> num_class_padded) ---
    out = jnp.dot(h.astype(jnp.bfloat16), w2_ref[...],
                  preferred_element_type=jnp.float32) + b2_ref[...]
    o_ref[...] = out.astype(o_ref.dtype)           # bf16 writeback


# ----------------------------------------------------------------------------
# Wrapper
# ----------------------------------------------------------------------------
def class_head_forward(x, prep, *, tb=512, out_dtype=jnp.float32):
    """x: (B, input_dim) f32.  prep: output of prepare_params()."""
    B, input_dim = x.shape
    w1, b1 = prep["w1"], prep["b1"]           # (input_dim, 512) bf16, (1, 512) f32
    w2, b2 = prep["w2"], prep["b2"]           # (512, N_pad) bf16,   (1, N_pad) f32
    num_class = prep["num_class"]
    n_pad = w2.shape[1]

    tb_eff = _pick_batch_tile(B, tb)
    grid = (pl.cdiv(B, tb_eff),)              # edge block is masked by Pallas

    flops = 2 * B * input_dim * BOTTLENECK + 2 * B * BOTTLENECK * n_pad
    bytes_accessed = (B * input_dim * 4 + w1.size * 2 + w2.size * 2
                      + b1.size * 4 + b2.size * 4 + B * n_pad * 2)

    out = pl.pallas_call(
        class_head_kernel,
        out_shape=jax.ShapeDtypeStruct((B, n_pad), jnp.bfloat16),
        grid=grid,
        in_specs=[
            pl.BlockSpec((tb_eff, input_dim), lambda i: (i, 0)),      # x tile (f32)
            pl.BlockSpec((input_dim, BOTTLENECK), lambda i: (0, 0)),  # w1 resident
            pl.BlockSpec((1, BOTTLENECK), lambda i: (0, 0)),          # b1 resident
            pl.BlockSpec((BOTTLENECK, n_pad), lambda i: (0, 0)),      # w2 resident
            pl.BlockSpec((1, n_pad), lambda i: (0, 0)),               # b2 resident
        ],
        out_specs=pl.BlockSpec((tb_eff, n_pad), lambda i: (i, 0)),
        compiler_params=pltpu.CompilerParams(
            dimension_semantics=("parallel",),
        ),
        cost_estimate=pl.CostEstimate(
            flops=flops, bytes_accessed=bytes_accessed, transcendentals=0),
    )(x, w1, b1, w2, b2)

    # Padded columns carry zero weight/bias; slice them away and cast once on
    # the small (B, num_class) result.
    return out[:, :num_class].astype(out_dtype)


# ----------------------------------------------------------------------------
# Parameter init (mirrors the PyTorch init scheme) and offline prep
# ----------------------------------------------------------------------------
def init_params(key, input_dim, num_class):
    k1, k2, k3 = jax.random.split(key, 3)

    # add_block Linear: kaiming_normal_, mode='fan_out', a=0 -> std = sqrt(2/out)
    std1 = (2.0 / BOTTLENECK) ** 0.5
    w1 = jax.random.normal(k1, (input_dim, BOTTLENECK), jnp.float32) * std1
    b1 = jnp.zeros((1, BOTTLENECK), jnp.float32)

    # BatchNorm1d: weight ~ N(1, 0.02), bias = 0; running stats at init.
    gamma = 1.0 + 0.02 * jax.random.normal(k2, (1, BOTTLENECK), jnp.float32)
    beta = jnp.zeros((1, BOTTLENECK), jnp.float32)
    running_mean = jnp.zeros((1, BOTTLENECK), jnp.float32)
    running_var = jnp.ones((1, BOTTLENECK), jnp.float32)

    # classifier Linear: weight ~ N(0, 0.001), bias = 0.
    w2 = 0.001 * jax.random.normal(k3, (BOTTLENECK, num_class), jnp.float32)
    b2 = jnp.zeros((1, num_class), jnp.float32)

    return dict(w1=w1, b1=b1, gamma=gamma, beta=beta,
                running_mean=running_mean, running_var=running_var,
                w2=w2, b2=b2)


def prepare_params(raw):
    """Fold eval-mode BN into Linear1, pad classifier to lane-dense N, cast bf16."""
    scale = raw["gamma"] * jax.lax.rsqrt(raw["running_var"] + BN_EPS)   # (1, 512)
    w1f = raw["w1"] * scale                                             # per-column
    b1f = (raw["b1"] - raw["running_mean"]) * scale + raw["beta"]

    num_class = raw["w2"].shape[1]
    n_pad = _round_up(num_class, 128)
    w2p = jnp.pad(raw["w2"], ((0, 0), (0, n_pad - num_class)))
    b2p = jnp.pad(raw["b2"], ((0, 0), (0, n_pad - num_class)))

    return dict(
        w1=w1f.astype(jnp.bfloat16),
        b1=b1f.astype(jnp.float32),
        w2=w2p.astype(jnp.bfloat16),
        b2=b2p.astype(jnp.float32),
        num_class=num_class,
    )


def reference_forward(x, prep):
    """Pure-JAX reference mirroring the kernel's bf16/f32 mixed precision."""
    xb = x.astype(jnp.bfloat16)
    h = jnp.dot(xb, prep["w1"], preferred_element_type=jnp.float32) + prep["b1"]
    h = jnp.where(h > 0, h, LEAKY_SLOPE * h).astype(jnp.bfloat16)
    out = jnp.dot(h, prep["w2"], preferred_element_type=jnp.float32) + prep["b2"]
    return out[:, :prep["num_class"]].astype(jnp.float32)


if __name__ == "__main__":
    B, INPUT_DIM, NUM_CLASS = 2, 64, 10

    key = jax.random.PRNGKey(0)
    kx, kp = jax.random.split(key)
    x = jax.random.normal(kx, (B, INPUT_DIM), jnp.float32)

    raw_params = init_params(kp, INPUT_DIM, NUM_CLASS)
    prep = prepare_params(raw_params)

    out = class_head_forward(x, prep)
    out = jax.block_until_ready(out)

    ref = reference_forward(x, prep)
    assert out.shape == (B, NUM_CLASS), out.shape
    assert jnp.allclose(out, ref, atol=2e-3, rtol=2e-2), (
        float(jnp.max(jnp.abs(out - ref))))

    print("KERNEL_OK")
</pallas_src>

<mosaic_0001>
module attributes {stable_mosaic.version = 11 : i64} {
  func.func @class_head_kernel(%arg0: i32, %arg1: memref<16x64xf32, #tpu.memory_space<vmem>>, %arg2: memref<64x512xbf16, #tpu.memory_space<vmem>>, %arg3: memref<1x512xf32, #tpu.memory_space<vmem>>, %arg4: memref<512x128xbf16, #tpu.memory_space<vmem>>, %arg5: memref<1x128xf32, #tpu.memory_space<vmem>>, %arg6: memref<16x128xbf16, #tpu.memory_space<vmem>>) attributes {dimension_semantics = [#tpu.dimension_semantics<parallel>], iteration_bounds = array<i64: 1>, scalar_prefetch = 0 : i64, scratch_operands = 0 : i64, tpu.core_type = #tpu.core_type<tc>, window_params = [{transform_indices = @transform_0, window_bounds = array<i64: 16, 64>}, {pipeline_mode = #tpu.pipeline_mode<synchronous>, transform_indices = @transform_1, window_bounds = array<i64: 64, 512>}, {pipeline_mode = #tpu.pipeline_mode<synchronous>, transform_indices = @transform_2, window_bounds = array<i64: 1, 512>}, {pipeline_mode = #tpu.pipeline_mode<synchronous>, transform_indices = @transform_3, window_bounds = array<i64: 512, 128>}, {pipeline_mode = #tpu.pipeline_mode<synchronous>, transform_indices = @transform_4, window_bounds = array<i64: 1, 128>}, {transform_indices = @transform_5, window_bounds = array<i64: 16, 128>}]} {
    %c0 = arith.constant 0 : index
    %c0_0 = arith.constant 0 : index
    %0 = vector.load %arg1[%c0, %c0_0] : memref<16x64xf32, #tpu.memory_space<vmem>>, vector<16x64xf32>
    %1 = arith.truncf %0 : vector<16x64xf32> to vector<16x64xbf16>
    %c0_1 = arith.constant 0 : index
    %c0_2 = arith.constant 0 : index
    %2 = vector.load %arg2[%c0_1, %c0_2] : memref<64x512xbf16, #tpu.memory_space<vmem>>, vector<64x512xbf16>
    %cst = arith.constant dense<0.000000e+00> : vector<16x512xf32>
    %3 = tpu.matmul %1, %2, %cst {dimension_numbers = #tpu.dot_dimension_numbers<[1], [0], [0], [1], [0, 0, 1, 1], [], []>} : vector<16x64xbf16>, vector<64x512xbf16>, vector<16x512xf32> -> vector<16x512xf32>
    %c0_3 = arith.constant 0 : index
    %c0_4 = arith.constant 0 : index
    %4 = vector.load %arg3[%c0_3, %c0_4] : memref<1x512xf32, #tpu.memory_space<vmem>>, vector<1x512xf32>
    %5 = vector.broadcast %4 : vector<1x512xf32> to vector<16x512xf32>
    %6 = arith.addf %3, %5 : vector<16x512xf32>
    %cst_5 = arith.constant 0.000000e+00 : f32
    %7 = vector.broadcast %cst_5 : f32 to vector<16x512xf32>
    %8 = arith.cmpf ogt, %6, %7 : vector<16x512xf32>
    %cst_6 = arith.constant 1.000000e-01 : f32
    %9 = vector.broadcast %cst_6 : f32 to vector<16x512xf32>
    %10 = arith.mulf %9, %6 : vector<16x512xf32>
    %11 = arith.select %8, %6, %10 : vector<16x512xi1>, vector<16x512xf32>
    %12 = arith.truncf %11 : vector<16x512xf32> to vector<16x512xbf16>
    %c0_7 = arith.constant 0 : index
    %c0_8 = arith.constant 0 : index
    %13 = vector.load %arg4[%c0_7, %c0_8] : memref<512x128xbf16, #tpu.memory_space<vmem>>, vector<512x128xbf16>
    %cst_9 = arith.constant dense<0.000000e+00> : vector<16x128xf32>
    %14 = tpu.matmul %12, %13, %cst_9 {dimension_numbers = #tpu.dot_dimension_numbers<[1], [0], [0], [1], [0, 0, 1, 1], [], []>} : vector<16x512xbf16>, vector<512x128xbf16>, vector<16x128xf32> -> vector<16x128xf32>
    %c0_10 = arith.constant 0 : index
    %c0_11 = arith.constant 0 : index
    %15 = vector.load %arg5[%c0_10, %c0_11] : memref<1x128xf32, #tpu.memory_space<vmem>>, vector<1x128xf32>
    %16 = vector.broadcast %15 : vector<1x128xf32> to vector<16x128xf32>
    %17 = arith.addf %14, %16 : vector<16x128xf32>
    %18 = arith.truncf %17 : vector<16x128xf32> to vector<16x128xbf16>
    %c0_12 = arith.constant 0 : index
    %c0_13 = arith.constant 0 : index
    %19 = vector.load %arg6[%c0_12, %c0_13] : memref<16x128xbf16, #tpu.memory_space<vmem>>, vector<16x128xbf16>
    tpu.vector_store %arg6[%c0_12, %c0_13], %18 {strides = array<i32>} : memref<16x128xbf16, #tpu.memory_space<vmem>>, vector<16x128xbf16>,
    return
  }
  func.func @transform_0(%arg0: i32) -> (i32, i32) {
    %c0_i32 = arith.constant 0 : i32
    %c0_i32_0 = arith.constant 0 : i32
    return %arg0, %c0_i32 : i32, i32
  }
  func.func @transform_1(%arg0: i32) -> (i32, i32) {
    %c0_i32 = arith.constant 0 : i32
    %c0_i32_0 = arith.constant 0 : i32
    %c0_i32_1 = arith.constant 0 : i32
    return %c0_i32, %c0_i32_0 : i32, i32
  }
  func.func @transform_2(%arg0: i32) -> (i32, i32) {
    %c0_i32 = arith.constant 0 : i32
    %c0_i32_0 = arith.constant 0 : i32
    %c0_i32_1 = arith.constant 0 : i32
    return %c0_i32, %c0_i32_0 : i32, i32
  }
  func.func @transform_3(%arg0: i32) -> (i32, i32) {
    %c0_i32 = arith.constant 0 : i32
    %c0_i32_0 = arith.constant 0 : i32
    %c0_i32_1 = arith.constant 0 : i32
    return %c0_i32, %c0_i32_0 : i32, i32
  }
  func.func @transform_4(%arg0: i32) -> (i32, i32) {
    %c0_i32 = arith.constant 0 : i32
    %c0_i32_0 = arith.constant 0 : i32
    %c0_i32_1 = arith.constant 0 : i32
    return %c0_i32, %c0_i32_0 : i32, i32
  }
  func.func @transform_5(%arg0: i32) -> (i32, i32) {
    %c0_i32 = arith.constant 0 : i32
    %c0_i32_0 = arith.constant 0 : i32
    return %arg0, %c0_i32 : i32, i32
  }
}

</mosaic_0001>

<llo_original>
// kernel: tpu_custom_call.1
$region0: #{tpu_custom_call.1}
  #allocation0 [shape = 'u32[]', space=smem, size = 0x4, offset = 0x4, fixed_abs, tag = 'smem constant byte address 0x4 - core index']
  #allocation1 [shape = 'u32[144,128]{1,0:T(1,128)}', space=vmem, size = 0x12000, scoped, tag = 'internal scratch']
  %s0 = inlined_call_operand.hbm [shape: f32[2,64], index: 0, kind: input, shape index: {}]
  %s1 = inlined_call_operand.hbm [shape: bf16[64,512], index: 1, kind: input, shape index: {}]
  %s2 = inlined_call_operand.hbm [shape: f32[1,512], index: 2, kind: input, shape index: {}]
  %s3 = inlined_call_operand.hbm [shape: bf16[512,128], index: 3, kind: input, shape index: {}]
  %s4 = inlined_call_operand.vmem [shape: f32[1,128], index: 4, kind: input, shape index: {}]
  %s5 = inlined_call_operand.hbm [shape: bf16[2,128], index: 5, kind: output, shape index: {}]
  %s6 = sld [smem:[#allocation0]]
  $region46: #{tpu_custom_call.1} parent=0
    _
  %s8 = ssub.s32 1, %s6
  %s9 = scalar_select 0, %s8, %s6
  $region1: #{tpu_custom_call.1} parent=0
    #allocation2 [shape = 'u8[8192]{0}', space=vmem, size = 0x2000, scoped, tag = 'input window, operand 0, single buffered']
    #allocation3 [shape = 's32[1]{0}', space=sflag, size = 0x4, scoped, tag = 'scoped memory for tpu_custom_call.1']
    #allocation4 [shape = 's32[1]{0}', space=sflag, size = 0x4, scoped, tag = 'scoped memory for tpu_custom_call.1']
    #allocation5 [shape = 'u8[65536]{0}', space=vmem, size = 0x10000, scoped, tag = 'input window, operand 1, single buffered']
    #allocation6 [shape = 's32[1]{0}', space=sflag, size = 0x4, scoped, tag = 'scoped memory for tpu_custom_call.1']
    #allocation7 [shape = 'u8[2048]{0}', space=vmem, size = 0x800, scoped, tag = 'input window, operand 2, single buffered']
    #allocation8 [shape = 'u8[131072]{0}', space=vmem, size = 0x20000, scoped, tag = 'input window, operand 3, single buffered']
    #allocation9 [shape = 's32[1]{0}', space=sflag, size = 0x4, scoped, tag = 'scoped memory for tpu_custom_call.1']
    #allocation10 [shape = 'u8[4096]{0}', space=vmem, size = 0x1000, scoped, tag = 'output window, operand 0, single buffered']
    %10 = vsyncpa [#allocation3], 0
    %11 = vsyncpa [#allocation6], 0
    %12 = vsyncpa [#allocation9], 0
    %13 = vsyncpa [#allocation4], 0
    // Predicated region
    $region2: #{tpu_custom_call.1} parent=1 // pred_check
      _
    $region3: #{tpu_custom_call.1} parent=1 // pred_check_branch
      %15 = sbr.rel (0) target = $region5
    $region4: #{tpu_custom_call.1} parent=1 // pred_region
      %s17 = ssub.s32 256, 32
      %18 = vsyncadd [#allocation3], %s17
      %s19 = sshll.u32 [#allocation2], 4
      %s20 = int_to_ptr.vmem [resolvable:$true] %s19
      %25 = dma.hbm_to_vmem [thread:$0]  %s0, 32, %s20, [#allocation3], 32, 32, 2
    $region5: #{tpu_custom_call.1} parent=1 // pred_fallthru
      _
    // Predicated region
    $region6: #{tpu_custom_call.1} parent=1 // pred_check
      _
    $region7: #{tpu_custom_call.1} parent=1 // pred_check_branch
      %27 = sbr.rel (0) target = $region9
    $region8: #{tpu_custom_call.1} parent=1 // pred_region
      %s29 = ssub.s32 2048, 2048
      %30 = vsyncadd [#allocation6], %s29
      %s31 = sshll.u32 [#allocation5], 4
      %s32 = int_to_ptr.vmem [resolvable:$true] %s31
      %37 = dma.hbm_to_vmem [thread:$0]  %s1, 2048, %s32, [#allocation6], 256, 256, 16
    $region9: #{tpu_custom_call.1} parent=1 // pred_fallthru
      _
    // Predicated region
    $region10: #{tpu_custom_call.1} parent=1 // pred_check
      _
    $region11: #{tpu_custom_call.1} parent=1 // pred_check_branch
      %39 = sbr.rel (0) target = $region13
    $region12: #{tpu_custom_call.1} parent=1 // pred_region
      %s41 = ssub.s32 64, 64
      %42 = vsyncadd [#allocation6], %s41
      %s44 = sshll.u32 [#allocation7], 4
      %s45 = int_to_ptr.vmem [resolvable:$true] %s44
      %47 = dma.hbm_to_vmem [thread:$0]  %s2, 64, %s45, [#allocation6]
    $region13: #{tpu_custom_call.1} parent=1 // pred_fallthru
      _
    // Predicated region
    $region14: #{tpu_custom_call.1} parent=1 // pred_check
      _
    $region15: #{tpu_custom_call.1} parent=1 // pred_check_branch
      %49 = sbr.rel (0) target = $region17
    $region16: #{tpu_custom_call.1} parent=1 // pred_region
      %s51 = ssub.s32 4096, 4096
      %52 = vsyncadd [#allocation9], %s51
      %s53 = sshll.u32 [#allocation8], 4
      %s54 = int_to_ptr.vmem [resolvable:$true] %s53
      %59 = dma.hbm_to_vmem [thread:$0]  %s3, 4096, %s54, [#allocation9], 64, 64, 4
    $region17: #{tpu_custom_call.1} parent=1 // pred_fallthru
      _
    // Predicated region
    $region18: #{tpu_custom_call.1} parent=1 // pred_check
      _
    $region19: #{tpu_custom_call.1} parent=1 // pred_check_branch
      %61 = sbr.rel (0) target = $region21
    $region20: #{tpu_custom_call.1} parent=1 // pred_region
      _
    $region21: #{tpu_custom_call.1} parent=1 // pred_fallthru
      _
    // Predicated region
    $region22: #{tpu_custom_call.1} parent=1 // pred_check
      _
    $region23: #{tpu_custom_call.1} parent=1 // pred_check_branch
      %63 = sbr.rel (0) target = $region25
    $region24: #{tpu_custom_call.1} parent=1 // pred_region
      %64 = dma.done [#allocation3], 256
    $region25: #{tpu_custom_call.1} parent=1 // pred_fallthru
      _
    // Predicated region
    $region26: #{tpu_custom_call.1} parent=1 // pred_check
      _
    $region27: #{tpu_custom_call.1} parent=1 // pred_check_branch
      %66 = sbr.rel (0) target = $region29
    $region28: #{tpu_custom_call.1} parent=1 // pred_region
      %67 = dma.done [#allocation6], 2048
    $region29: #{tpu_custom_call.1} parent=1 // pred_fallthru
      _
    // Predicated region
    $region30: #{tpu_custom_call.1} parent=1 // pred_check
      _
    $region31: #{tpu_custom_call.1} parent=1 // pred_check_branch
      %69 = sbr.rel (0) target = $region33
    $region32: #{tpu_custom_call.1} parent=1 // pred_region
      %70 = dma.done [#allocation6], 64
    $region33: #{tpu_custom_call.1} parent=1 // pred_fallthru
      _
    // Predicated region
    $region34: #{tpu_custom_call.1} parent=1 // pred_check
      _
    $region35: #{tpu_custom_call.1} parent=1 // pred_check_branch
      %72 = sbr.rel (0) target = $region37
    $region36: #{tpu_custom_call.1} parent=1 // pred_region
      %73 = dma.done [#allocation9], 4096
    $region37: #{tpu_custom_call.1} parent=1 // pred_fallthru
      _
    %v75 = vld [vmem:[#allocation2] sm:$0xff]
    %v76 = vld [vmem:[#allocation2 + $0x8] sm:$0xff]
    %v77 = vpack.c.bf16 %v76, %v75
    %v78 = vld [vmem:[#allocation5] sm:$0xff]
    %v79 = vld [vmem:[#allocation5 + $0x8] sm:$0xff]
    %v80 = vld [vmem:[#allocation5 + $0x10] sm:$0xff]
    %v81 = vld [vmem:[#allocation5 + $0x18] sm:$0xff]
    %v82 = vld [vmem:[#allocation5 + $0x20] sm:$0xff]
    %v83 = vld [vmem:[#allocation5 + $0x28] sm:$0xff]
    %v84 = vld [vmem:[#allocation5 + $0x30] sm:$0xff]
    %v85 = vld [vmem:[#allocation5 + $0x38] sm:$0xff]
    %v86 = vld [vmem:[#allocation5 + $0x40] sm:$0xff]
    %v87 = vld [vmem:[#allocation5 + $0x48] sm:$0xff]
    %v88 = vld [vmem:[#allocation5 + $0x50] sm:$0xff]
    %v89 = vld [vmem:[#allocation5 + $0x58] sm:$0xff]
    %v90 = vld [vmem:[#allocation5 + $0x60] sm:$0xff]
    %v91 = vld [vmem:[#allocation5 + $0x68] sm:$0xff]
    %v92 = vld [vmem:[#allocation5 + $0x70] sm:$0xff]
    %v93 = vld [vmem:[#allocation5 + $0x78] sm:$0xff]
    %v94 = vld [vmem:[#allocation7] sm:$0xf]
    %v96 = vlaneseq
    %v97 = vshrl.u32 %v96, 7
    %v98 = vsub.s32 0, %v97
    %v99 = vrot.slane %v94, %v98
    %v100 = vlaneseq
    %v101 = vshrl.u32 %v100, 7
    %v102 = vsub.s32 1, %v101
    %v103 = vrot.slane %v94, %v102
    %v104 = vlaneseq
    %v105 = vshrl.u32 %v104, 7
    %v106 = vsub.s32 2, %v105
    %v107 = vrot.slane %v94, %v106
    %v108 = vlaneseq
    %v109 = vshrl.u32 %v108, 7
    %v110 = vsub.s32 3, %v109
    %v111 = vrot.slane %v94, %v110
    %v132 = vunpack.c.l.b16 %v78
    %v133 = vunpack.c.h.b16 %v78
    %v134 = vunpack.c.l.b16 %v79
    %v135 = vunpack.c.h.b16 %v79
    %v136 = vunpack.c.l.b16 %v80
    %v137 = vunpack.c.h.b16 %v80
    %v138 = vunpack.c.l.b16 %v81
    %v139 = vunpack.c.h.b16 %v81
    %v140 = vunpack.c.l.b16 %v82
    %v141 = vunpack.c.h.b16 %v82
    %v142 = vunpack.c.l.b16 %v83
    %v143 = vunpack.c.h.b16 %v83
    %v144 = vunpack.c.l.b16 %v84
    %v145 = vunpack.c.h.b16 %v84
    %v146 = vunpack.c.l.b16 %v85
    %v147 = vunpack.c.h.b16 %v85
    %v148 = vunpack.c.l.b16 %v86
    %v149 = vunpack.c.h.b16 %v86
    %v150 = vunpack.c.l.b16 %v87
    %v151 = vunpack.c.h.b16 %v87
    %v152 = vunpack.c.l.b16 %v88
    %v153 = vunpack.c.h.b16 %v88
    %v154 = vunpack.c.l.b16 %v89
    %v155 = vunpack.c.h.b16 %v89
    %v156 = vunpack.c.l.b16 %v90
    %v157 = vunpack.c.h.b16 %v90
    %v158 = vunpack.c.l.b16 %v91
    %v159 = vunpack.c.h.b16 %v91
    %v160 = vunpack.c.l.b16 %v92
    %v161 = vunpack.c.h.b16 %v92
    %v162 = vunpack.c.l.b16 %v93
    %v163 = vunpack.c.h.b16 %v93
    %v164 = vpack.c.b16 %v136, %v132
    %v165 = vpack.c.b16 %v137, %v133
    %v166 = vpack.c.b16 %v138, %v134
    %v167 = vpack.c.b16 %v139, %v135
    %v168 = vpack.c.b16 %v144, %v140
    %v169 = vpack.c.b16 %v145, %v141
    %v170 = vpack.c.b16 %v146, %v142
    %v171 = vpack.c.b16 %v147, %v143
    %v172 = vpack.c.b16 %v152, %v148
    %v173 = vpack.c.b16 %v153, %v149
    %v174 = vpack.c.b16 %v154, %v150
    %v175 = vpack.c.b16 %v155, %v151
    %v176 = vpack.c.b16 %v160, %v156
    %v177 = vpack.c.b16 %v161, %v157
    %v178 = vpack.c.b16 %v162, %v158
    %v179 = vpack.c.b16 %v163, %v159
    %vm196 = vcmask 523264
    %v198 = vsel %vm196, %v77, 0
    %200 = vmatprep.subr.bf16.mxu0 0
    %201 = vmatpush1.bf16.msra.mxu0 0
    %202 = vmatprep.subr.bf16.mxu0 0
    %203 = vmatpush1.bf16.msra.mxu0 0
    %204 = vmatprep.subr.bf16.mxu0 0
    %205 = vmatpush1.bf16.msra.mxu0 0
    %206 = vmatprep.subr.bf16.mxu0 0
    %207 = vmatpush1.bf16.msra.mxu0 0
    %208 = vmatprep.subr.bf16.mxu0 %v177
    %209 = vmatpush1.bf16.msra.mxu0 %v176
    %210 = vmatprep.subr.bf16.mxu0 %v173
    %211 = vmatpush1.bf16.msra.mxu0 %v172
    %212 = vmatprep.subr.bf16.mxu0 %v169
    %213 = vmatpush1.bf16.msra.mxu0 %v168
    %214 = vmatprep.subr.bf16.mxu0 %v165
    %215 = vmatpush1.bf16.msra.mxu0 %v164
    %216 = vmatprep.subr.bf16.mxu0 0
    %217 = vmatpush2.bf16.msra.mxu0 0
    %218 = vmatprep.subr.bf16.mxu0 0
    %219 = vmatpush2.bf16.msra.mxu0 0
    %220 = vmatprep.subr.bf16.mxu0 0
    %221 = vmatpush2.bf16.msra.mxu0 0
    %222 = vmatprep.subr.bf16.mxu0 0
    %223 = vmatpush2.bf16.msra.mxu0 0
    %224 = vmatprep.subr.bf16.mxu0 0
    %225 = vmatpush2.bf16.msra.mxu0 0
    %226 = vmatprep.subr.bf16.mxu0 0
    %227 = vmatpush2.bf16.msra.mxu0 0
    %228 = vmatprep.subr.bf16.mxu0 0
    %229 = vmatpush2.bf16.msra.mxu0 0
    %230 = vmatprep.subr.bf16.mxu0 0
    %231 = vmatpush2.bf16.msra.mxu0 0
    %232 = vmatprep.mubr.bf16.mxu0 0
    %233 = vmatmul.mubr.bf16.gmra.mxu0 %v198
    %v234 = vpop.f32.mrf.mxu0
    %v235 = vadd.f32 %v99, %v234
    %v236 = vpop.f32.mrf.mxu0
    %v237 = vadd.f32 %v103, %v236
    %v238 = vpop.f32.mrf.mxu0
    %v239 = vadd.f32 %v99, %v238
    %v240 = vpop.f32.mrf.mxu0
    %v241 = vadd.f32 %v103, %v240
    %242 = vdwg.mxu0
    %243 = vmatprep.subr.bf16.mxu0 0
    %244 = vmatpush1.bf16.msra.mxu0 0
    %245 = vmatprep.subr.bf16.mxu0 0
    %246 = vmatpush1.bf16.msra.mxu0 0
    %247 = vmatprep.subr.bf16.mxu0 0
    %248 = vmatpush1.bf16.msra.mxu0 0
    %249 = vmatprep.subr.bf16.mxu0 0
    %250 = vmatpush1.bf16.msra.mxu0 0
    %251 = vmatprep.subr.bf16.mxu0 %v179
    %252 = vmatpush1.bf16.msra.mxu0 %v178
    %253 = vmatprep.subr.bf16.mxu0 %v175
    %254 = vmatpush1.bf16.msra.mxu0 %v174
    %255 = vmatprep.subr.bf16.mxu0 %v171
    %256 = vmatpush1.bf16.msra.mxu0 %v170
    %257 = vmatprep.subr.bf16.mxu0 %v167
    %258 = vmatpush1.bf16.msra.mxu0 %v166
    %259 = vmatprep.subr.bf16.mxu0 0
    %260 = vmatpush2.bf16.msra.mxu0 0
    %261 = vmatprep.subr.bf16.mxu0 0
    %262 = vmatpush2.bf16.msra.mxu0 0
    %263 = vmatprep.subr.bf16.mxu0 0
    %264 = vmatpush2.bf16.msra.mxu0 0
    %265 = vmatprep.subr.bf16.mxu0 0
    %266 = vmatpush2.bf16.msra.mxu0 0
    %267 = vmatprep.subr.bf16.mxu0 0
    %268 = vmatpush2.bf16.msra.mxu0 0
    %269 = vmatprep.subr.bf16.mxu0 0
    %270 = vmatpush2.bf16.msra.mxu0 0
    %271 = vmatprep.subr.bf16.mxu0 0
    %272 = vmatpush2.bf16.msra.mxu0 0
    %273 = vmatprep.subr.bf16.mxu0 0
    %274 = vmatpush2.bf16.msra.mxu0 0
    %275 = vmatprep.mubr.bf16.mxu0 0
    %276 = vmatmul.mubr.bf16.gmra.mxu0 %v198
    %v277 = vpop.f32.mrf.mxu0
    %v278 = vadd.f32 %v107, %v277
    %v279 = vpop.f32.mrf.mxu0
    %v280 = vadd.f32 %v111, %v279
    %v281 = vpop.f32.mrf.mxu0
    %v282 = vadd.f32 %v107, %v281
    %v283 = vpop.f32.mrf.mxu0
    %v284 = vadd.f32 %v111, %v283
    %285 = vdwg.mxu0
    %vm286 = vcmp.gt.f32.partialorder %v235, 0.0
    %vm287 = vcmp.gt.f32.partialorder %v237, 0.0
    %vm288 = vcmp.gt.f32.partialorder %v278, 0.0
    %vm289 = vcmp.gt.f32.partialorder %v280, 0.0
    %vm290 = vcmp.gt.f32.partialorder %v239, 0.0
    %vm291 = vcmp.gt.f32.partialorder %v241, 0.0
    %vm292 = vcmp.gt.f32.partialorder %v282, 0.0
    %vm293 = vcmp.gt.f32.partialorder %v284, 0.0
    %v294 = vmul.f32 %v235, 0.1
    %v295 = vmul.f32 %v237, 0.1
    %v296 = vmul.f32 %v278, 0.1
    %v297 = vmul.f32 %v280, 0.1
    %v298 = vmul.f32 %v239, 0.1
    %v299 = vmul.f32 %v241, 0.1
    %v300 = vmul.f32 %v282, 0.1
    %v301 = vmul.f32 %v284, 0.1
    %v302 = vsel %vm286, %v235, %v294
    %v303 = vsel %vm287, %v237, %v295
    %v304 = vsel %vm288, %v278, %v296
    %v305 = vsel %vm289, %v280, %v297
    %v306 = vsel %vm290, %v239, %v298
    %v307 = vsel %vm291, %v241, %v299
    %v308 = vsel %vm292, %v282, %v300
    %v309 = vsel %vm293, %v284, %v301
    %v310 = vpack.c.bf16 %v306, %v302
    %v311 = vpack.c.bf16 %v307, %v303
    %v312 = vpack.c.bf16 %v308, %v304
    %v313 = vpack.c.bf16 %v309, %v305
    %v314 = vld [vmem:[#allocation8] sm:$0xf]
    %v315 = vld [vmem:[#allocation8 + $0x4] sm:$0xf]
    %v316 = vld [vmem:[#allocation8 + $0x8] sm:$0xf]
    %v317 = vld [vmem:[#allocation8 + $0xc] sm:$0xf]
    %v318 = vld [vmem:[#allocation8 + $0x10] sm:$0xf]
    %v319 = vld [vmem:[#allocation8 + $0x14] sm:$0xf]
    %v320 = vld [vmem:[#allocation8 + $0x18] sm:$0xf]
    %v321 = vld [vmem:[#allocation8 + $0x1c] sm:$0xf]
    %v322 = vld [vmem:[#allocation8 + $0x20] sm:$0xf]
    %v323 = vld [vmem:[#allocation8 + $0x24] sm:$0xf]
    %v324 = vld [vmem:[#allocation8 + $0x28] sm:$0xf]
    %v325 = vld [vmem:[#allocation8 + $0x2c] sm:$0xf]
    %v326 = vld [vmem:[#allocation8 + $0x30] sm:$0xf]
    %v327 = vld [vmem:[#allocation8 + $0x34] sm:$0xf]
    %v328 = vld [vmem:[#allocation8 + $0x38] sm:$0xf]
    %v329 = vld [vmem:[#allocation8 + $0x3c] sm:$0xf]
    %v330 = vld [vmem:[#allocation8 + $0x40] sm:$0xf]
    %v331 = vld [vmem:[#allocation8 + $0x44] sm:$0xf]
    %v332 = vld [vmem:[#allocation8 + $0x48] sm:$0xf]
    %v333 = vld [vmem:[#allocation8 + $0x4c] sm:$0xf]
    %v334 = vld [vmem:[#allocation8 + $0x50] sm:$0xf]
    %v335 = vld [vmem:[#allocation8 + $0x54] sm:$0xf]
    %v336 = vld [vmem:[#allocation8 + $0x58] sm:$0xf]
    %v337 = vld [vmem:[#allocation8 + $0x5c] sm:$0xf]
    %v338 = vld [vmem:[#allocation8 + $0x60] sm:$0xf]
    %v339 = vld [vmem:[#allocation8 + $0x64] sm:$0xf]
    %v340 = vld [vmem:[#allocation8 + $0x68] sm:$0xf]
    %v341 = vld [vmem:[#allocation8 + $0x6c] sm:$0xf]
    %v342 = vld [vmem:[#allocation8 + $0x70] sm:$0xf]
    %v343 = vld [vmem:[#allocation8 + $0x74] sm:$0xf]
    %v344 = vld [vmem:[#allocation8 + $0x78] sm:$0xf]
    %v345 = vld [vmem:[#allocation8 + $0x7c] sm:$0xf]
    %v346 = vld [vmem:[#allocation8 + $0x80] sm:$0xf]
    %v347 = vld [vmem:[#allocation8 + $0x84] sm:$0xf]
    %v348 = vld [vmem:[#allocation8 + $0x88] sm:$0xf]
    %v349 = vld [vmem:[#allocation8 + $0x8c] sm:$0xf]
    %v350 = vld [vmem:[#allocation8 + $0x90] sm:$0xf]
    %v351 = vld [vmem:[#allocation8 + $0x94] sm:$0xf]
    %v352 = vld [vmem:[#allocation8 + $0x98] sm:$0xf]
    %v353 = vld [vmem:[#allocation8 + $0x9c] sm:$0xf]
    %v354 = vld [vmem:[#allocation8 + $0xa0] sm:$0xf]
    %v355 = vld [vmem:[#allocation8 + $0xa4] sm:$0xf]
    %v356 = vld [vmem:[#allocation8 + $0xa8] sm:$0xf]
    %v357 = vld [vmem:[#allocation8 + $0xac] sm:$0xf]
    %v358 = vld [vmem:[#allocation8 + $0xb0] sm:$0xf]
    %v359 = vld [vmem:[#allocation8 + $0xb4] sm:$0xf]
    %v360 = vld [vmem:[#allocation8 + $0xb8] sm:$0xf]
    %v361 = vld [vmem:[#allocation8 + $0xbc] sm:$0xf]
    %v362 = vld [vmem:[#allocation8 + $0xc0] sm:$0xf]
    %v363 = vld [vmem:[#allocation8 + $0xc4] sm:$0xf]
    %v364 = vld [vmem:[#allocation8 + $0xc8] sm:$0xf]
    %v365 = vld [vmem:[#allocation8 + $0xcc] sm:$0xf]
    %v366 = vld [vmem:[#allocation8 + $0xd0] sm:$0xf]
    %v367 = vld [vmem:[#allocation8 + $0xd4] sm:$0xf]
    %v368 = vld [vmem:[#allocation8 + $0xd8] sm:$0xf]
    %v369 = vld [vmem:[#allocation8 + $0xdc] sm:$0xf]
    %v370 = vld [vmem:[#allocation8 + $0xe0] sm:$0xf]
    %v371 = vld [vmem:[#allocation8 + $0xe4] sm:$0xf]
    %v372 = vld [vmem:[#allocation8 + $0xe8] sm:$0xf]
    %v373 = vld [vmem:[#allocation8 + $0xec] sm:$0xf]
    %v374 = vld [vmem:[#allocation8 + $0xf0] sm:$0xf]
    %v375 = vld [vmem:[#allocation8 + $0xf4] sm:$0xf]
    %v376 = vld [vmem:[#allocation8 + $0xf8] sm:$0xf]
    %v377 = vld [vmem:[#allocation8 + $0xfc] sm:$0xf]
    %v378 = vld [vmem:[%s4] sm:$0x1]
    %v380 = vlaneseq
    %v381 = vshrl.u32 %v380, 7
    %v382 = vsub.s32 0, %v381
    %v383 = vrot.slane %v378, %v382
    %v449 = vunpack.c.l.b16 %v314
    %v450 = vunpack.c.l.b16 %v315
    %v451 = vunpack.c.l.b16 %v316
    %v452 = vunpack.c.l.b16 %v317
    %v453 = vunpack.c.l.b16 %v318
    %v454 = vunpack.c.l.b16 %v319
    %v455 = vunpack.c.l.b16 %v320
    %v456 = vunpack.c.l.b16 %v321
    %v457 = vunpack.c.l.b16 %v322
    %v458 = vunpack.c.l.b16 %v323
    %v459 = vunpack.c.l.b16 %v324
    %v460 = vunpack.c.l.b16 %v325
    %v461 = vunpack.c.l.b16 %v326
    %v462 = vunpack.c.l.b16 %v327
    %v463 = vunpack.c.l.b16 %v328
    %v464 = vunpack.c.l.b16 %v329
    %v465 = vunpack.c.l.b16 %v330
    %v466 = vunpack.c.l.b16 %v331
    %v467 = vunpack.c.l.b16 %v332
    %v468 = vunpack.c.l.b16 %v333
    %v469 = vunpack.c.l.b16 %v334
    %v470 = vunpack.c.l.b16 %v335
    %v471 = vunpack.c.l.b16 %v336
    %v472 = vunpack.c.l.b16 %v337
    %v473 = vunpack.c.l.b16 %v338
    %v474 = vunpack.c.l.b16 %v339
    %v475 = vunpack.c.l.b16 %v340
    %v476 = vunpack.c.l.b16 %v341
    %v477 = vunpack.c.l.b16 %v342
    %v478 = vunpack.c.l.b16 %v343
    %v479 = vunpack.c.l.b16 %v344
    %v480 = vunpack.c.l.b16 %v345
    %v481 = vunpack.c.l.b16 %v346
    %v482 = vunpack.c.l.b16 %v347
    %v483 = vunpack.c.l.b16 %v348
    %v484 = vunpack.c.l.b16 %v349
    %v485 = vunpack.c.l.b16 %v350
    %v486 = vunpack.c.l.b16 %v351
    %v487 = vunpack.c.l.b16 %v352
    %v488 = vunpack.c.l.b16 %v353
    %v489 = vunpack.c.l.b16 %v354
    %v490 = vunpack.c.l.b16 %v355
    %v491 = vunpack.c.l.b16 %v356
    %v492 = vunpack.c.l.b16 %v357
    %v493 = vunpack.c.l.b16 %v358
    %v494 = vunpack.c.l.b16 %v359
    %v495 = vunpack.c.l.b16 %v360
    %v496 = vunpack.c.l.b16 %v361
    %v497 = vunpack.c.l.b16 %v362
    %v498 = vunpack.c.l.b16 %v363
    %v499 = vunpack.c.l.b16 %v364
    %v500 = vunpack.c.l.b16 %v365
    %v501 = vunpack.c.l.b16 %v366
    %v502 = vunpack.c.l.b16 %v367
    %v503 = vunpack.c.l.b16 %v368
    %v504 = vunpack.c.l.b16 %v369
    %v505 = vunpack.c.l.b16 %v370
    %v506 = vunpack.c.l.b16 %v371
    %v507 = vunpack.c.l.b16 %v372
    %v508 = vunpack.c.l.b16 %v373
    %v509 = vunpack.c.l.b16 %v374
    %v510 = vunpack.c.l.b16 %v375
    %v511 = vunpack.c.l.b16 %v376
    %v512 = vunpack.c.l.b16 %v377
    %v513 = vpack.c.b16 %v450, %v449
    %v514 = vpack.c.b16 %v452, %v451
    %v515 = vpack.c.b16 %v454, %v453
    %v516 = vpack.c.b16 %v456, %v455
    %v517 = vpack.c.b16 %v458, %v457
    %v518 = vpack.c.b16 %v460, %v459
    %v519 = vpack.c.b16 %v462, %v461
    %v520 = vpack.c.b16 %v464, %v463
    %v521 = vpack.c.b16 %v466, %v465
    %v522 = vpack.c.b16 %v468, %v467
    %v523 = vpack.c.b16 %v470, %v469
    %v524 = vpack.c.b16 %v472, %v471
    %v525 = vpack.c.b16 %v474, %v473
    %v526 = vpack.c.b16 %v476, %v475
    %v527 = vpack.c.b16 %v478, %v477
    %v528 = vpack.c.b16 %v480, %v479
    %v529 = vpack.c.b16 %v482, %v481
    %v530 = vpack.c.b16 %v484, %v483
    %v531 = vpack.c.b16 %v486, %v485
    %v532 = vpack.c.b16 %v488, %v487
    %v533 = vpack.c.b16 %v490, %v489
    %v534 = vpack.c.b16 %v492, %v491
    %v535 = vpack.c.b16 %v494, %v493
    %v536 = vpack.c.b16 %v496, %v495
    %v537 = vpack.c.b16 %v498, %v497
    %v538 = vpack.c.b16 %v500, %v499
    %v539 = vpack.c.b16 %v502, %v501
    %v540 = vpack.c.b16 %v504, %v503
    %v541 = vpack.c.b16 %v506, %v505
    %v542 = vpack.c.b16 %v508, %v507
    %v543 = vpack.c.b16 %v510, %v509
    %v544 = vpack.c.b16 %v512, %v511
    %577 = vmatprep.subr.bf16.mxu0 0
    %578 = vmatpush1.bf16.msra.mxu0 %v520
    %579 = vmatprep.subr.bf16.mxu0 0
    %580 = vmatpush1.bf16.msra.mxu0 %v519
    %581 = vmatprep.subr.bf16.mxu0 0
    %582 = vmatpush1.bf16.msra.mxu0 %v518
    %583 = vmatprep.subr.bf16.mxu0 0
    %584 = vmatpush1.bf16.msra.mxu0 %v517
    %585 = vmatprep.subr.bf16.mxu0 0
    %586 = vmatpush1.bf16.msra.mxu0 %v516
    %587 = vmatprep.subr.bf16.mxu0 0
    %588 = vmatpush1.bf16.msra.mxu0 %v515
    %589 = vmatprep.subr.bf16.mxu0 0
    %590 = vmatpush1.bf16.msra.mxu0 %v514
    %591 = vmatprep.subr.bf16.mxu0 0
    %592 = vmatpush1.bf16.msra.mxu0 %v513
    %593 = vmatprep.subr.bf16.mxu0 0
    %594 = vmatpush2.bf16.msra.mxu0 %v528
    %595 = vmatprep.subr.bf16.mxu0 0
    %596 = vmatpush2.bf16.msra.mxu0 %v527
    %597 = vmatprep.subr.bf16.mxu0 0
    %598 = vmatpush2.bf16.msra.mxu0 %v526
    %599 = vmatprep.subr.bf16.mxu0 0
    %600 = vmatpush2.bf16.msra.mxu0 %v525
    %601 = vmatprep.subr.bf16.mxu0 0
    %602 = vmatpush2.bf16.msra.mxu0 %v524
    %603 = vmatprep.subr.bf16.mxu0 0
    %604 = vmatpush2.bf16.msra.mxu0 %v523
    %605 = vmatprep.subr.bf16.mxu0 0
    %606 = vmatpush2.bf16.msra.mxu0 %v522
    %607 = vmatprep.subr.bf16.mxu0 0
    %608 = vmatpush2.bf16.msra.mxu0 %v521
    %609 = vmatprep.mubr.bf16.mxu0 %v311
    %610 = vmatmul.mubr.bf16.gmra.mxu0 %v310
    %v611 = vpop.f32.mrf.mxu0
    %v612 = vadd.f32 %v383, %v611
    %v613 = vpop.f32.mrf.mxu0
    %v614 = vpop.f32.mrf.mxu0
    %v615 = vadd.f32 %v383, %v614
    %v616 = vpop.f32.mrf.mxu0
    %617 = vdwg.mxu0
    %618 = vmatprep.subr.bf16.mxu0 0
    %619 = vmatpush1.bf16.msra.mxu0 %v536
    %620 = vmatprep.subr.bf16.mxu0 0
    %621 = vmatpush1.bf16.msra.mxu0 %v535
    %622 = vmatprep.subr.bf16.mxu0 0
    %623 = vmatpush1.bf16.msra.mxu0 %v534
    %624 = vmatprep.subr.bf16.mxu0 0
    %625 = vmatpush1.bf16.msra.mxu0 %v533
    %626 = vmatprep.subr.bf16.mxu0 0
    %627 = vmatpush1.bf16.msra.mxu0 %v532
    %628 = vmatprep.subr.bf16.mxu0 0
    %629 = vmatpush1.bf16.msra.mxu0 %v531
    %630 = vmatprep.subr.bf16.mxu0 0
    %631 = vmatpush1.bf16.msra.mxu0 %v530
    %632 = vmatprep.subr.bf16.mxu0 0
    %633 = vmatpush1.bf16.msra.mxu0 %v529
    %634 = vmatprep.subr.bf16.mxu0 0
    %635 = vmatpush2.bf16.msra.mxu0 %v544
    %636 = vmatprep.subr.bf16.mxu0 0
    %637 = vmatpush2.bf16.msra.mxu0 %v543
    %638 = vmatprep.subr.bf16.mxu0 0
    %639 = vmatpush2.bf16.msra.mxu0 %v542
    %640 = vmatprep.subr.bf16.mxu0 0
    %641 = vmatpush2.bf16.msra.mxu0 %v541
    %642 = vmatprep.subr.bf16.mxu0 0
    %643 = vmatpush2.bf16.msra.mxu0 %v540
    %644 = vmatprep.subr.bf16.mxu0 0
    %645 = vmatpush2.bf16.msra.mxu0 %v539
    %646 = vmatprep.subr.bf16.mxu0 0
    %647 = vmatpush2.bf16.msra.mxu0 %v538
    %648 = vmatprep.subr.bf16.mxu0 0
    %649 = vmatpush2.bf16.msra.mxu0 %v537
    %650 = vmatprep.mubr.bf16.mxu0 %v313
    %651 = vmatmul.mubr.bf16.gmra.mxu0 %v312
    %v652 = vpop.f32.mrf.mxu0
    %v653 = vadd.f32 %v612, %v652
    %v654 = vpop.f32.mrf.mxu0
    %v655 = vpop.f32.mrf.mxu0
    %v656 = vadd.f32 %v615, %v655
    %v657 = vpop.f32.mrf.mxu0
    %658 = vdwg.mxu0
    %v659 = vpack.c.bf16 %v656, %v653
    %v661 = vcombine.high %v659, %v659
    %v663 = vunpack.c.l.s4 1966171168
    %v664 = vunpack.c.0.s8 %v663
    %v665 = vlaneseq
    %v666 = vshrl.u32 %v665, 7
    %v667 = vsub.s32 %v664, %v666
    %v668 = vrot.slane %v659, %v667
    %v670 = vunpack.c.l.s4 1966171168
    %v671 = vunpack.c.0.s8 %v670
    %v672 = vlaneseq
    %v673 = vshrl.u32 %v672, 7
    %v674 = vsub.s32 %v671, %v673
    %v675 = vrot.slane %v661, %v674
    %v676 = vcombine.high %v668, %v668
    %v677 = vcombine.high %v675, %v675
    %v679 = vunpack.c.l.s4 1966171168
    %v680 = vunpack.c.0.s8 %v679
    %v681 = vlaneseq
    %v682 = vshrl.u32 %v681, 7
    %v683 = vsub.s32 %v680, %v682
    %v684 = vrot.slane %v668, %v683
    %v686 = vunpack.c.l.s4 1966171168
    %v687 = vunpack.c.0.s8 %v686
    %v688 = vlaneseq
    %v689 = vshrl.u32 %v688, 7
    %v690 = vsub.s32 %v687, %v689
    %v691 = vrot.slane %v675, %v690
    %v693 = vunpack.c.l.s4 1966171168
    %v694 = vunpack.c.0.s8 %v693
    %v695 = vlaneseq
    %v696 = vshrl.u32 %v695, 7
    %v697 = vsub.s32 %v694, %v696
    %v698 = vrot.slane %v676, %v697
    %v700 = vunpack.c.l.s4 1966171168
    %v701 = vunpack.c.0.s8 %v700
    %v702 = vlaneseq
    %v703 = vshrl.u32 %v702, 7
    %v704 = vsub.s32 %v701, %v703
    %v705 = vrot.slane %v677, %v704
    %v706 = vcombine.high %v684, %v684
    %v707 = vcombine.high %v691, %v691
    %v708 = vcombine.high %v698, %v698
    %v709 = vcombine.high %v705, %v705
    %718 = vst [vmem:[#allocation10] sm:$0x1] %v684
    %719 = vst [vmem:[#allocation10 + $0x1] sm:$0x1] %v698
    %720 = vst [vmem:[#allocation10 + $0x2] sm:$0x1] %v706
    %721 = vst [vmem:[#allocation10 + $0x3] sm:$0x1] %v708
    %722 = vst [vmem:[#allocation10 + $0x4] sm:$0x1] %v691
    %723 = vst [vmem:[#allocation10 + $0x5] sm:$0x1] %v705
    %724 = vst [vmem:[#allocation10 + $0x6] sm:$0x1] %v707
    %725 = vst [vmem:[#allocation10 + $0x7] sm:$0x1] %v709
    // Predicated region
    $region38: #{tpu_custom_call.1} parent=1 // pred_check
      _
    $region39: #{tpu_custom_call.1} parent=1 // pred_check_branch
      %727 = sbr.rel (0) target = $region41
    $region40: #{tpu_custom_call.1} parent=1 // pred_region
      %s729 = ssub.s32 128, 16
      %730 = vsyncadd [#allocation4], %s729
      %s731 = sshll.u32 [#allocation10], 4
      %s732 = int_to_ptr.vmem [resolvable:$true] %s731
      %737 = dma.vmem_to_hbm [thread:$0]  %s732, 16, %s5, [#allocation4], 16, 16, 1
    $region41: #{tpu_custom_call.1} parent=1 // pred_fallthru
      _
    // Predicated region
    $region42: #{tpu_custom_call.1} parent=1 // pred_check
      _
    $region43: #{tpu_custom_call.1} parent=1 // pred_check_branch
      %739 = sbr.rel (0) target = $region45
    $region44: #{tpu_custom_call.1} parent=1 // pred_region
      %740 = dma.done [#allocation4], 128
    $region45: #{tpu_custom_call.1} parent=1 // pred_fallthru
      _
    %741 = vsyncpa [#allocation3], 1
    %742 = vsyncpa [#allocation6], 1
    %743 = vsyncpa [#allocation9], 1
    %744 = vsyncpa [#allocation4], 1

</llo_original>
